<compile_context>
chip_gen: v7x
topology: tpu7x:2x2x1
jax: 0.10.0
libtpu: 0.0.40
codegen_flags: <defaults>
</compile_context>

<pallas_src>
import functools

import jax
import jax.numpy as jnp
from jax.experimental import pallas as pl
from jax.experimental.pallas import tpu as pltpu


LANE = 128      # channel dims padded to this (lane-dense, full MXU lanes)
SUBLANE = 16    # batch-tile granularity (16 rows = one packed bf16 vreg)


def _round_up(x, m):
    return (x + m - 1) // m * m


# ----------------------------- Pallas kernel -------------------------------- #

def _make_fused_mlp_kernel(num_layers):
    """Fused Linear -> ReLU -> ... -> Linear for one (ensemble, batch-tile) grid
    point.  BN affine is pre-folded; weights are (K, M) bf16, biases (1, M) f32.
    The layer loop is unrolled at trace time; activations never leave vregs."""

    def kernel(*refs):
        x_ref = refs[0]
        o_ref = refs[-1]
        h = x_ref[...].astype(jnp.float32)                    # (tm, C0_pad)
        for l in range(num_layers):
            w_ref = refs[1 + 2 * l]                           # (C_l_pad, C_{l+1}_pad)
            b_ref = refs[2 + 2 * l]                           # (1,       C_{l+1}_pad)
            h = jnp.dot(h.astype(w_ref.dtype), w_ref[...],
                        preferred_element_type=jnp.float32)   # MXU, f32 accumulation
            h = h + b_ref[...].astype(jnp.float32)
            if l < num_layers - 1:
                h = jnp.maximum(h, 0.0)                       # ReLU (f32 epilogue)
        o_ref[...] = h.astype(o_ref.dtype)

    return kernel


# ------------------------------ JAX wrapper --------------------------------- #

@functools.partial(jax.jit, static_argnames=("out_channels", "block_rows"))
def mlp_forward(x, flat_params, out_channels, block_rows=512):
    """Fused ensemble-MLP forward.

    x:           (E, N, in_channels) f32
    flat_params: (w0, b0, w1, b1, ...) stacked over the ensemble:
                 w_l: (E, C_l_pad, C_{l+1}_pad) bf16 (BN-folded, pre-transposed)
                 b_l: (E, 1,        C_{l+1}_pad) f32  (BN-folded)
    returns:     (E, N, out_channels) f32
    """
    num_layers = len(flat_params) // 2
    E, N, in_c = x.shape
    cin_pad = flat_params[0].shape[1]
    cout_pad = flat_params[-1].shape[-1]

    # Batch tile: multiple of 16 rows (bf16 sublane packing), capped at block_rows.
    tm = min(block_rows, _round_up(max(N, 1), SUBLANE))
    n_pad = _round_up(N, tm)

    # Zero-pad rows to the tile size and columns to the lane-dense padded width
    # (padding is sliced away below; zeros are a no-op for the real rows/cols).
    x_pad = jnp.pad(x.astype(jnp.float32),
                    ((0, 0), (0, n_pad - N), (0, cin_pad - in_c)))

    grid = (E, n_pad // tm)

    in_specs = [pl.BlockSpec((None, tm, cin_pad), lambda e, i: (e, i, 0))]
    for l in range(num_layers):
        w = flat_params[2 * l]
        b = flat_params[2 * l + 1]
        in_specs.append(pl.BlockSpec((None,) + w.shape[1:], lambda e, i: (e, 0, 0)))
        in_specs.append(pl.BlockSpec((None,) + b.shape[1:], lambda e, i: (e, 0, 0)))
    out_spec = pl.BlockSpec((None, tm, cout_pad), lambda e, i: (e, i, 0))

    # Advisory cost estimate for XLA's scheduler.
    flops = 0
    param_bytes = 0
    for l in range(num_layers):
        w = flat_params[2 * l]
        b = flat_params[2 * l + 1]
        flops += 2 * E * n_pad * w.shape[1] * w.shape[2]
        param_bytes += w.size * w.dtype.itemsize + b.size * b.dtype.itemsize
    bytes_accessed = x_pad.size * 4 + param_bytes + E * n_pad * cout_pad * 4
    cost = pl.CostEstimate(flops=flops, transcendentals=0,
                           bytes_accessed=bytes_accessed)

    # VMEM budget: double-buffered x/out tiles + double-buffered per-member params
    # + activation headroom.  Clamped to stay safe inside v7x's 64 MiB VMEM.
    max_width = max([cin_pad] + [flat_params[2 * l].shape[2] for l in range(num_layers)])
    vmem_bytes = 2 * tm * (cin_pad + cout_pad) * 4
    for l in range(num_layers):
        w = flat_params[2 * l]
        vmem_bytes += 2 * (w.shape[1] * w.shape[2] * w.dtype.itemsize
                           + 8 * w.shape[2] * 4)
    vmem_bytes += 4 * tm * max_width * 4
    vmem_limit = int(min(max(2 * vmem_bytes, 32 * 2**20), 48 * 2**20))

    out_pad = pl.pallas_call(
        _make_fused_mlp_kernel(num_layers),
        out_shape=jax.ShapeDtypeStruct((E, n_pad, cout_pad), jnp.float32),
        grid=grid,
        in_specs=in_specs,
        out_specs=out_spec,
        compiler_params=pltpu.CompilerParams(
            dimension_semantics=("parallel", "parallel"),
            vmem_limit_bytes=vmem_limit),
        cost_estimate=cost,
    )(x_pad, *flat_params)

    return out_pad[:, :N, :out_channels]


# --------------------------- parameter preparation -------------------------- #

def init_mlp_params(key, in_channels, hidden_channels, out_channels, num_layers,
                    eps=1e-5):
    """Init mirroring the PyTorch module: Linear(out, in) with uniform(+-1/sqrt(fan_in)),
    BatchNorm1d fresh init (gamma=1, beta=0, running_mean=0, running_var=1)."""
    dims = [in_channels] + [hidden_channels] * (num_layers - 1) + [out_channels]
    lins = []
    for i in range(num_layers):
        key, kw, kb = jax.random.split(key, 3)
        bound = float(dims[i]) ** -0.5
        w = jax.random.uniform(kw, (dims[i + 1], dims[i]), jnp.float32, -bound, bound)
        b = jax.random.uniform(kb, (dims[i + 1],), jnp.float32, -bound, bound)
        lins.append((w, b))

    bns = []
    for _ in range(num_layers - 1):
        gamma = jnp.ones((hidden_channels,), jnp.float32)
        beta = jnp.zeros((hidden_channels,), jnp.float32)
        running_mean = jnp.zeros((hidden_channels,), jnp.float32)
        running_var = jnp.ones((hidden_channels,), jnp.float32)
        scale = gamma / jnp.sqrt(running_var + eps)   # > 0 for fresh init
        shift = beta - running_mean * scale           # = 0 for fresh init
        bns.append((scale, shift))
    return lins, bns


def fold_params(lins, bns, param_dtype=jnp.bfloat16):
    """Pre-transpose W to (in, out), fold each eval-mode BN affine into the
    Linears, zero-pad all channel dims to multiples of LANE (lane-dense), and
    cast weights to `param_dtype` (bf16 for the native MXU path).  Biases f32."""
    num_layers = len(lins)
    flat = []
    pending_shift = None
    for l in range(num_layers):
        w, b = lins[l]                       # (out, in), (out,)
        w_t = w.T.astype(jnp.float32)        # (in, out) -- transposed ONCE here
        b = b.astype(jnp.float32)
        if pending_shift is not None:
            b = b + pending_shift @ w_t      # fold previous BN shift into bias
        if l < num_layers - 1:
            scale, shift = bns[l]
            # relu(z)*scale == relu(z*scale) only for scale > 0 (fresh-init BN).
            assert bool(jnp.all(scale > 0.0)), "BN fold requires positive scale"
            w_t = w_t * scale[None, :]
            b = b * scale
            pending_shift = shift
        k, m = w_t.shape
        k_pad, m_pad = _round_up(k, LANE), _round_up(m, LANE)
        w_t = jnp.pad(w_t, ((0, k_pad - k), (0, m_pad - m))).astype(param_dtype)
        b = jnp.pad(b, (0, m_pad - m)).reshape(1, m_pad)
        flat.append(w_t)
        flat.append(b)
    return tuple(flat)


def stack_ensemble_params(member_flat_params):
    """Stack E members' folded params along a leading ensemble axis."""
    n = len(member_flat_params[0])
    return tuple(jnp.stack([m[i] for m in member_flat_params], axis=0)
                 for i in range(n))


# ------------------------------ pure-JAX references ------------------------- #

def _reference_forward_module(x, lins, bns):
    """f32 reference following the PyTorch forward (relu_last=False, p=0, eval BN)."""
    h = x
    for (w, b), (scale, shift) in zip(lins[:-1], bns):
        h = jnp.dot(h, w.T, precision=jax.lax.Precision.HIGHEST) + b
        h = jnp.maximum(h, 0.0)
        h = h * scale + shift
    w, b = lins[-1]
    return jnp.dot(h, w.T, precision=jax.lax.Precision.HIGHEST) + b


def _reference_forward_folded(x, flat_params, out_channels):
    """Pure-JAX mirror of the exact kernel math (folded, padded, bf16 weights,
    f32 accumulation) — tight correctness check for the Pallas implementation."""
    E, N, in_c = x.shape
    cin_pad = flat_params[0].shape[1]
    h = jnp.pad(x.astype(jnp.float32), ((0, 0), (0, 0), (0, cin_pad - in_c)))
    num_layers = len(flat_params) // 2
    for l in range(num_layers):
        w = flat_params[2 * l]
        b = flat_params[2 * l + 1]
        h = jnp.einsum("enk,ekm->enm", h.astype(w.dtype), w,
                       preferred_element_type=jnp.float32) + b
        if l < num_layers - 1:
            h = jnp.maximum(h, 0.0)
    return h[:, :, :out_channels]


# ---------------------------------- main ------------------------------------ #

if __name__ == "__main__":
    key = jax.random.PRNGKey(0)
    k_x, k_p = jax.random.split(key)

    E = 4                  # ensemble members batched into one pallas_call
    N = 8                  # per-member batch
    IN_C, HID_C, OUT_C = 16, 32, 8
    NUM_LAYERS = 3

    x = jax.random.normal(k_x, (E, N, IN_C), jnp.float32)

    member_keys = jax.random.split(k_p, E)
    members = [init_mlp_params(k, IN_C, HID_C, OUT_C, NUM_LAYERS)
               for k in member_keys]

    # TODO(synk): dropout with p>0 (training mode) not implemented; module default p=0.0.
    flat_params = stack_ensemble_params(
        [fold_params(lins, bns) for lins, bns in members])

    out = mlp_forward(x, flat_params, out_channels=OUT_C)
    out = jax.block_until_ready(out)

    assert out.shape == (E, N, OUT_C), out.shape
    assert bool(jnp.all(jnp.isfinite(out)))

    # Tight check: kernel vs identical (folded, padded, bf16-weight) jnp math.
    ref_folded = _reference_forward_folded(x, flat_params, OUT_C)
    err_tight = float(jnp.max(jnp.abs(out - ref_folded)))
    assert err_tight < 1e-3, err_tight

    # Loose check: kernel vs module-semantics f32 reference; the only expected
    # difference is the bf16 weight/activation quantization on the MXU path.
    ref_module = jnp.stack(
        [_reference_forward_module(x[e], members[e][0], members[e][1])
         for e in range(E)])
    err_loose = float(jnp.max(jnp.abs(out - ref_module)))
    assert err_loose < 1e-1, err_loose

    print("KERNEL_OK")
</pallas_src>

<mosaic_0001>
module attributes {stable_mosaic.version = 11 : i64} {
  func.func @kernel(%arg0: i32, %arg1: i32, %arg2: memref<1x16x128xf32, #tpu.memory_space<vmem>>, %arg3: memref<1x128x128xbf16, #tpu.memory_space<vmem>>, %arg4: memref<1x1x128xf32, #tpu.memory_space<vmem>>, %arg5: memref<1x128x128xbf16, #tpu.memory_space<vmem>>, %arg6: memref<1x1x128xf32, #tpu.memory_space<vmem>>, %arg7: memref<1x128x128xbf16, #tpu.memory_space<vmem>>, %arg8: memref<1x1x128xf32, #tpu.memory_space<vmem>>, %arg9: memref<1x16x128xf32, #tpu.memory_space<vmem>>) attributes {dimension_semantics = [#tpu.dimension_semantics<parallel>, #tpu.dimension_semantics<parallel>], iteration_bounds = array<i64: 4, 1>, scalar_prefetch = 0 : i64, scratch_operands = 0 : i64, tpu.core_type = #tpu.core_type<tc>, window_params = [{transform_indices = @transform_0, window_bounds = array<i64: 1, 16, 128>}, {transform_indices = @transform_1, window_bounds = array<i64: 1, 128, 128>}, {transform_indices = @transform_2, window_bounds = array<i64: 1, 1, 128>}, {transform_indices = @transform_3, window_bounds = array<i64: 1, 128, 128>}, {transform_indices = @transform_4, window_bounds = array<i64: 1, 1, 128>}, {transform_indices = @transform_5, window_bounds = array<i64: 1, 128, 128>}, {transform_indices = @transform_6, window_bounds = array<i64: 1, 1, 128>}, {transform_indices = @transform_7, window_bounds = array<i64: 1, 16, 128>}]} {
    %c0 = arith.constant 0 : index
    %c0_0 = arith.constant 0 : index
    %c0_1 = arith.constant 0 : index
    %0 = vector.load %arg2[%c0, %c0_0, %c0_1] : memref<1x16x128xf32, #tpu.memory_space<vmem>>, vector<1x16x128xf32>
    %1 = vector.shape_cast %0 : vector<1x16x128xf32> to vector<16x128xf32>
    %2 = arith.truncf %1 : vector<16x128xf32> to vector<16x128xbf16>
    %c0_2 = arith.constant 0 : index
    %c0_3 = arith.constant 0 : index
    %c0_4 = arith.constant 0 : index
    %3 = vector.load %arg3[%c0_2, %c0_3, %c0_4] : memref<1x128x128xbf16, #tpu.memory_space<vmem>>, vector<1x128x128xbf16>
    %4 = vector.shape_cast %3 : vector<1x128x128xbf16> to vector<128x128xbf16>
    %cst = arith.constant dense<0.000000e+00> : vector<16x128xf32>
    %5 = tpu.matmul %2, %4, %cst {dimension_numbers = #tpu.dot_dimension_numbers<[1], [0], [0], [1], [0, 0, 1, 1], [], []>} : vector<16x128xbf16>, vector<128x128xbf16>, vector<16x128xf32> -> vector<16x128xf32>
    %c0_5 = arith.constant 0 : index
    %c0_6 = arith.constant 0 : index
    %c0_7 = arith.constant 0 : index
    %6 = vector.load %arg4[%c0_5, %c0_6, %c0_7] : memref<1x1x128xf32, #tpu.memory_space<vmem>>, vector<1x1x128xf32>
    %7 = vector.shape_cast %6 : vector<1x1x128xf32> to vector<1x128xf32>
    %8 = vector.broadcast %7 : vector<1x128xf32> to vector<16x128xf32>
    %9 = arith.addf %5, %8 : vector<16x128xf32>
    %cst_8 = arith.constant 0.000000e+00 : f32
    %10 = vector.broadcast %cst_8 : f32 to vector<16x128xf32>
    %11 = arith.maximumf %9, %10 : vector<16x128xf32>
    %12 = arith.truncf %11 : vector<16x128xf32> to vector<16x128xbf16>
    %c0_9 = arith.constant 0 : index
    %c0_10 = arith.constant 0 : index
    %c0_11 = arith.constant 0 : index
    %13 = vector.load %arg5[%c0_9, %c0_10, %c0_11] : memref<1x128x128xbf16, #tpu.memory_space<vmem>>, vector<1x128x128xbf16>
    %14 = vector.shape_cast %13 : vector<1x128x128xbf16> to vector<128x128xbf16>
    %cst_12 = arith.constant dense<0.000000e+00> : vector<16x128xf32>
    %15 = tpu.matmul %12, %14, %cst_12 {dimension_numbers = #tpu.dot_dimension_numbers<[1], [0], [0], [1], [0, 0, 1, 1], [], []>} : vector<16x128xbf16>, vector<128x128xbf16>, vector<16x128xf32> -> vector<16x128xf32>
    %c0_13 = arith.constant 0 : index
    %c0_14 = arith.constant 0 : index
    %c0_15 = arith.constant 0 : index
    %16 = vector.load %arg6[%c0_13, %c0_14, %c0_15] : memref<1x1x128xf32, #tpu.memory_space<vmem>>, vector<1x1x128xf32>
    %17 = vector.shape_cast %16 : vector<1x1x128xf32> to vector<1x128xf32>
    %18 = vector.broadcast %17 : vector<1x128xf32> to vector<16x128xf32>
    %19 = arith.addf %15, %18 : vector<16x128xf32>
    %cst_16 = arith.constant 0.000000e+00 : f32
    %20 = vector.broadcast %cst_16 : f32 to vector<16x128xf32>
    %21 = arith.maximumf %19, %20 : vector<16x128xf32>
    %22 = arith.truncf %21 : vector<16x128xf32> to vector<16x128xbf16>
    %c0_17 = arith.constant 0 : index
    %c0_18 = arith.constant 0 : index
    %c0_19 = arith.constant 0 : index
    %23 = vector.load %arg7[%c0_17, %c0_18, %c0_19] : memref<1x128x128xbf16, #tpu.memory_space<vmem>>, vector<1x128x128xbf16>
    %24 = vector.shape_cast %23 : vector<1x128x128xbf16> to vector<128x128xbf16>
    %cst_20 = arith.constant dense<0.000000e+00> : vector<16x128xf32>
    %25 = tpu.matmul %22, %24, %cst_20 {dimension_numbers = #tpu.dot_dimension_numbers<[1], [0], [0], [1], [0, 0, 1, 1], [], []>} : vector<16x128xbf16>, vector<128x128xbf16>, vector<16x128xf32> -> vector<16x128xf32>
    %c0_21 = arith.constant 0 : index
    %c0_22 = arith.constant 0 : index
    %c0_23 = arith.constant 0 : index
    %26 = vector.load %arg8[%c0_21, %c0_22, %c0_23] : memref<1x1x128xf32, #tpu.memory_space<vmem>>, vector<1x1x128xf32>
    %27 = vector.shape_cast %26 : vector<1x1x128xf32> to vector<1x128xf32>
    %28 = vector.broadcast %27 : vector<1x128xf32> to vector<16x128xf32>
    %29 = arith.addf %25, %28 : vector<16x128xf32>
    %c0_24 = arith.constant 0 : index
    %c0_25 = arith.constant 0 : index
    %c0_26 = arith.constant 0 : index
    %30 = vector.load %arg9[%c0_24, %c0_25, %c0_26] : memref<1x16x128xf32, #tpu.memory_space<vmem>>, vector<1x16x128xf32>
    %31 = vector.shape_cast %30 : vector<1x16x128xf32> to vector<16x128xf32>
    %32 = vector.shape_cast %29 : vector<16x128xf32> to vector<1x16x128xf32>
    tpu.vector_store %arg9[%c0_24, %c0_25, %c0_26], %32 {strides = array<i32>} : memref<1x16x128xf32, #tpu.memory_space<vmem>>, vector<1x16x128xf32>,
    return
  }
  func.func @transform_0(%arg0: i32, %arg1: i32) -> (i32, i32, i32) {
    %c0_i32 = arith.constant 0 : i32
    %c0_i32_0 = arith.constant 0 : i32
    return %arg0, %arg1, %c0_i32 : i32, i32, i32
  }
  func.func @transform_1(%arg0: i32, %arg1: i32) -> (i32, i32, i32) {
    %c0_i32 = arith.constant 0 : i32
    %c0_i32_0 = arith.constant 0 : i32
    %c0_i32_1 = arith.constant 0 : i32
    return %arg0, %c0_i32, %c0_i32_0 : i32, i32, i32
  }
  func.func @transform_2(%arg0: i32, %arg1: i32) -> (i32, i32, i32) {
    %c0_i32 = arith.constant 0 : i32
    %c0_i32_0 = arith.constant 0 : i32
    %c0_i32_1 = arith.constant 0 : i32
    return %arg0, %c0_i32, %c0_i32_0 : i32, i32, i32
  }
  func.func @transform_3(%arg0: i32, %arg1: i32) -> (i32, i32, i32) {
    %c0_i32 = arith.constant 0 : i32
    %c0_i32_0 = arith.constant 0 : i32
    %c0_i32_1 = arith.constant 0 : i32
    return %arg0, %c0_i32, %c0_i32_0 : i32, i32, i32
  }
  func.func @transform_4(%arg0: i32, %arg1: i32) -> (i32, i32, i32) {
    %c0_i32 = arith.constant 0 : i32
    %c0_i32_0 = arith.constant 0 : i32
    %c0_i32_1 = arith.constant 0 : i32
    return %arg0, %c0_i32, %c0_i32_0 : i32, i32, i32
  }
  func.func @transform_5(%arg0: i32, %arg1: i32) -> (i32, i32, i32) {
    %c0_i32 = arith.constant 0 : i32
    %c0_i32_0 = arith.constant 0 : i32
    %c0_i32_1 = arith.constant 0 : i32
    return %arg0, %c0_i32, %c0_i32_0 : i32, i32, i32
  }
  func.func @transform_6(%arg0: i32, %arg1: i32) -> (i32, i32, i32) {
    %c0_i32 = arith.constant 0 : i32
    %c0_i32_0 = arith.constant 0 : i32
    %c0_i32_1 = arith.constant 0 : i32
    return %arg0, %c0_i32, %c0_i32_0 : i32, i32, i32
  }
  func.func @transform_7(%arg0: i32, %arg1: i32) -> (i32, i32, i32) {
    %c0_i32 = arith.constant 0 : i32
    %c0_i32_0 = arith.constant 0 : i32
    return %arg0, %arg1, %c0_i32 : i32, i32, i32
  }
}

</mosaic_0001>

<llo_original>
// kernel: mlp_forward.1
$region0: #{mlp_forward.1}
  #allocation0 [shape = 'u32[]', space=smem, size = 0x4, offset = 0x4, fixed_abs, tag = 'smem constant byte address 0x4 - core index']
  #allocation1 [shape = 'u32[144,128]{1,0:T(1,128)}', space=vmem, size = 0x12000, scoped, tag = 'internal scratch']
  %s0 = inlined_call_operand.vmem [shape: f32[4,16,128], index: 0, kind: input, shape index: {}]
  %s1 = inlined_call_operand.hbm [shape: bf16[4,128,128], index: 1, kind: input, shape index: {}]
  %s2 = inlined_call_operand.vmem [shape: f32[4,1,128], index: 2, kind: input, shape index: {}]
  %s3 = inlined_call_operand.hbm [shape: bf16[4,128,128], index: 3, kind: input, shape index: {}]
  %s4 = inlined_call_operand.vmem [shape: f32[4,1,128], index: 4, kind: input, shape index: {}]
  %s5 = inlined_call_operand.hbm [shape: bf16[4,128,128], index: 5, kind: input, shape index: {}]
  %s6 = inlined_call_operand.vmem [shape: f32[4,1,128], index: 6, kind: input, shape index: {}]
  %s7 = inlined_call_operand.vmem [shape: f32[4,16,128], index: 7, kind: output, shape index: {}]
  %s8 = sld [smem:[#allocation0]]
  $region73: #{mlp_forward.1} parent=0
    _
  %s10 = ssub.s32 1, %s8
  %s11 = scalar_select 0, %s10, %s8
  $region1: #{mlp_forward.1} parent=0
    #allocation2 [shape = 'u8[65536]{0}', space=vmem, size = 0x10000, scoped, tag = 'input window, operand 1']
    #allocation3 [shape = 's32[2]{0}', space=sflag, size = 0x8, scoped, tag = 'scoped memory for mlp_forward.1']
    #allocation4 [shape = 'u8[65536]{0}', space=vmem, size = 0x10000, scoped, tag = 'input window, operand 3']
    #allocation5 [shape = 's32[2]{0}', space=sflag, size = 0x8, scoped, tag = 'scoped memory for mlp_forward.1']
    #allocation6 [shape = 'u8[65536]{0}', space=vmem, size = 0x10000, scoped, tag = 'input window, operand 5']
    %12 = vsyncpa [#allocation3], 0
    %s13 = scalar_lea.sflag [#allocation3], 1
    %14 = vsyncpa %s13, 0
    %15 = vsyncpa [#allocation5], 0
    %s16 = scalar_lea.sflag [#allocation5], 1
    %17 = vsyncpa %s16, 0
    loop: start=0, step=1, limit=6
    $region2: #{mlp_forward.1} parent=1 // loop_pre_header
      _
    $region3: #{mlp_forward.1} parent=1 // loop_header
      %s19 = sphi 0, %s23
      %p20 = scmp.ge.s32.totalorder %s19, 6
      %s26 = sphi 0, %s38
      %s27 = sphi 0, %s34
      %s28 = sphi 0, %s26
      %s29 = sphi 0, %s27
      %s30 = sphi 0, %s28
      %s31 = sphi 0, %s29
      %s43 = sphi 0, %s45
      %s46 = sphi 0, %s43
      %s47 = sphi 0, %s46
      %s63 = sphi 0, %s47
      %s69 = sphi 0, %s71
      %s72 = sphi 0, %s69
      %s73 = sphi 0, %s72
      %s89 = sphi 0, %s73
      %s95 = sphi 0, %s97
      %s98 = sphi 0, %s95
      %s99 = sphi 0, %s98
      %s115 = sphi 0, %s99
      %s121 = sphi 0, %s123
      %s124 = sphi 0, %s121
      %s125 = sphi 0, %s124
      %s141 = sphi 0, %s125
      %s147 = sphi 0, %s149
      %s150 = sphi 0, %s147
      %s151 = sphi 0, %s150
      %s167 = sphi 0, %s151
      %s173 = sphi 0, %s175
      %s176 = sphi 0, %s173
      %s177 = sphi 0, %s176
      %s193 = sphi 0, %s177
      %s199 = sphi 0, %s201
      %s202 = sphi 0, %s199
      %s203 = sphi 0, %s202
      %s219 = sphi 0, %s203
      %s227 = sphi 0, %s229
      %s230 = sphi 0, %s227
      %s231 = sphi 0, %s230
      %s247 = sphi 0, %s231
    $region4: #{mlp_forward.1} parent=1 // loop_header_branch
      %22 = sbr.rel (%p20) target = $region8
    $region5: #{mlp_forward.1} parent=1 // loop_body
      %s24 = ssub.s32 %s19, 1
      %s25 = ssub.s32 %s19, 2
      %s32 = sadd.s32 1, %s27
      %p33 = scmp.ge.s32.totalorder %s32, 1
      %s34 = scalar_select %p33, 0, %s32
      %s35 = sadd.s32 1, %s26
      %s36 = scalar_select %p33, %s35, %s26
      %p37 = scmp.ge.s32.totalorder %s36, 4
      %s38 = scalar_select %p37, 0, %s36
      %s39 = ssub.s32 %s26, %s38
      %s40 = ssub.s32 %s27, %s34
      %s41 = sor.u32 %s39, %s40
      %p42 = scmp.eq.s32.totalorder %s41, 0
      %s44 = sadd.s32 %s43, 1
      %s45 = scalar_select %p42, %s43, %s44
      %p48 = pneg %p42
      %p49 = scmp.eq.s32.totalorder %s19, 3
      %p50 = por %p48, %p49
      %p51 = scmp.ne.s32.totalorder %s43, %s46
      %p52 = scmp.eq.s32.totalorder %s19, 0
      %p53 = por %p51, %p52
      %p54 = scmp.ne.s32.totalorder %s43, %s46
      %p55 = scmp.eq.s32.totalorder %s24, 3
      %p56 = por %p54, %p55
      %p57 = scmp.ne.s32.totalorder %s46, %s47
      %p58 = scmp.eq.s32.totalorder %s24, 0
      %p59 = por %p57, %p58
      %p60 = scmp.ne.s32.totalorder %s46, %s47
      %p61 = scmp.eq.s32.totalorder %s25, 3
      %p62 = por %p60, %p61
      %p64 = scmp.ne.s32.totalorder %s47, %s63
      %p65 = scmp.eq.s32.totalorder %s25, 0
      %p66 = por %p64, %p65
      %s67 = ssub.s32 %s26, %s38
      %p68 = scmp.eq.s32.totalorder %s67, 0
      %s70 = sadd.s32 %s69, 1
      %s71 = scalar_select %p68, %s69, %s70
      %p74 = pneg %p68
      %p75 = scmp.eq.s32.totalorder %s19, 3
      %p76 = por %p74, %p75
      %p77 = scmp.ne.s32.totalorder %s69, %s72
      %p78 = scmp.eq.s32.totalorder %s19, 0
      %p79 = por %p77, %p78
      %p80 = scmp.ne.s32.totalorder %s69, %s72
      %p81 = scmp.eq.s32.totalorder %s24, 3
      %p82 = por %p80, %p81
      %p83 = scmp.ne.s32.totalorder %s72, %s73
      %p84 = scmp.eq.s32.totalorder %s24, 0
      %p85 = por %p83, %p84
      %p86 = scmp.ne.s32.totalorder %s72, %s73
      %p87 = scmp.eq.s32.totalorder %s25, 3
      %p88 = por %p86, %p87
      %p90 = scmp.ne.s32.totalorder %s73, %s89
      %p91 = scmp.eq.s32.totalorder %s25, 0
      %p92 = por %p90, %p91
      %s93 = ssub.s32 %s26, %s38
      %p94 = scmp.eq.s32.totalorder %s93, 0
      %s96 = sadd.s32 %s95, 1
      %s97 = scalar_select %p94, %s95, %s96
      %p100 = pneg %p94
      %p101 = scmp.eq.s32.totalorder %s19, 3
      %p102 = por %p100, %p101
      %p103 = scmp.ne.s32.totalorder %s95, %s98
      %p104 = scmp.eq.s32.totalorder %s19, 0
      %p105 = por %p103, %p104
      %p106 = scmp.ne.s32.totalorder %s95, %s98
      %p107 = scmp.eq.s32.totalorder %s24, 3
      %p108 = por %p106, %p107
      %p109 = scmp.ne.s32.totalorder %s98, %s99
      %p110 = scmp.eq.s32.totalorder %s24, 0
      %p111 = por %p109, %p110
      %p112 = scmp.ne.s32.totalorder %s98, %s99
      %p113 = scmp.eq.s32.totalorder %s25, 3
      %p114 = por %p112, %p113
      %p116 = scmp.ne.s32.totalorder %s99, %s115
      %p117 = scmp.eq.s32.totalorder %s25, 0
      %p118 = por %p116, %p117
      %s119 = ssub.s32 %s26, %s38
      %p120 = scmp.eq.s32.totalorder %s119, 0
      %s122 = sadd.s32 %s121, 1
      %s123 = scalar_select %p120, %s121, %s122
      %p126 = pneg %p120
      %p127 = scmp.eq.s32.totalorder %s19, 3
      %p128 = por %p126, %p127
      %p129 = scmp.ne.s32.totalorder %s121, %s124
      %p130 = scmp.eq.s32.totalorder %s19, 0
      %p131 = por %p129, %p130
      %p132 = scmp.ne.s32.totalorder %s121, %s124
      %p133 = scmp.eq.s32.totalorder %s24, 3
      %p134 = por %p132, %p133
      %p135 = scmp.ne.s32.totalorder %s124, %s125
      %p136 = scmp.eq.s32.totalorder %s24, 0
      %p137 = por %p135, %p136
      %p138 = scmp.ne.s32.totalorder %s124, %s125
      %p139 = scmp.eq.s32.totalorder %s25, 3
      %p140 = por %p138, %p139
      %p142 = scmp.ne.s32.totalorder %s125, %s141
      %p143 = scmp.eq.s32.totalorder %s25, 0
      %p144 = por %p142, %p143
      %s145 = ssub.s32 %s26, %s38
      %p146 = scmp.eq.s32.totalorder %s145, 0
      %s148 = sadd.s32 %s147, 1
      %s149 = scalar_select %p146, %s147, %s148
      %p152 = pneg %p146
      %p153 = scmp.eq.s32.totalorder %s19, 3
      %p154 = por %p152, %p153
      %p155 = scmp.ne.s32.totalorder %s147, %s150
      %p156 = scmp.eq.s32.totalorder %s19, 0
      %p157 = por %p155, %p156
      %p158 = scmp.ne.s32.totalorder %s147, %s150
      %p159 = scmp.eq.s32.totalorder %s24, 3
      %p160 = por %p158, %p159
      %p161 = scmp.ne.s32.totalorder %s150, %s151
      %p162 = scmp.eq.s32.totalorder %s24, 0
      %p163 = por %p161, %p162
      %p164 = scmp.ne.s32.totalorder %s150, %s151
      %p165 = scmp.eq.s32.totalorder %s25, 3
      %p166 = por %p164, %p165
      %p168 = scmp.ne.s32.totalorder %s151, %s167
      %p169 = scmp.eq.s32.totalorder %s25, 0
      %p170 = por %p168, %p169
      %s171 = ssub.s32 %s26, %s38
      %p172 = scmp.eq.s32.totalorder %s171, 0
      %s174 = sadd.s32 %s173, 1
      %s175 = scalar_select %p172, %s173, %s174
      %p178 = pneg %p172
      %p179 = scmp.eq.s32.totalorder %s19, 3
      %p180 = por %p178, %p179
      %p181 = scmp.ne.s32.totalorder %s173, %s176
      %p182 = scmp.eq.s32.totalorder %s19, 0
      %p183 = por %p181, %p182
      %p184 = scmp.ne.s32.totalorder %s173, %s176
      %p185 = scmp.eq.s32.totalorder %s24, 3
      %p186 = por %p184, %p185
      %p187 = scmp.ne.s32.totalorder %s176, %s177
      %p188 = scmp.eq.s32.totalorder %s24, 0
      %p189 = por %p187, %p188
      %p190 = scmp.ne.s32.totalorder %s176, %s177
      %p191 = scmp.eq.s32.totalorder %s25, 3
      %p192 = por %p190, %p191
      %p194 = scmp.ne.s32.totalorder %s177, %s193
      %p195 = scmp.eq.s32.totalorder %s25, 0
      %p196 = por %p194, %p195
      %s197 = ssub.s32 %s26, %s38
      %p198 = scmp.eq.s32.totalorder %s197, 0
      %s200 = sadd.s32 %s199, 1
      %s201 = scalar_select %p198, %s199, %s200
      %p204 = pneg %p198
      %p205 = scmp.eq.s32.totalorder %s19, 3
      %p206 = por %p204, %p205
      %p207 = scmp.ne.s32.totalorder %s199, %s202
      %p208 = scmp.eq.s32.totalorder %s19, 0
      %p209 = por %p207, %p208
      %p210 = scmp.ne.s32.totalorder %s199, %s202
      %p211 = scmp.eq.s32.totalorder %s24, 3
      %p212 = por %p210, %p211
      %p213 = scmp.ne.s32.totalorder %s202, %s203
      %p214 = scmp.eq.s32.totalorder %s24, 0
      %p215 = por %p213, %p214
      %p216 = scmp.ne.s32.totalorder %s202, %s203
      %p217 = scmp.eq.s32.totalorder %s25, 3
      %p218 = por %p216, %p217
      %p220 = scmp.ne.s32.totalorder %s203, %s219
      %p221 = scmp.eq.s32.totalorder %s25, 0
      %p222 = por %p220, %p221
      %s223 = ssub.s32 %s26, %s38
      %s224 = ssub.s32 %s27, %s34
      %s225 = sor.u32 %s223, %s224
      %p226 = scmp.eq.s32.totalorder %s225, 0
      %s228 = sadd.s32 %s227, 1
      %s229 = scalar_select %p226, %s227, %s228
      %p232 = pneg %p226
      %p233 = scmp.eq.s32.totalorder %s19, 3
      %p234 = por %p232, %p233
      %p235 = scmp.ne.s32.totalorder %s227, %s230
      %p236 = scmp.eq.s32.totalorder %s19, 0
      %p237 = por %p235, %p236
      %p238 = scmp.ne.s32.totalorder %s227, %s230
      %p239 = scmp.eq.s32.totalorder %s24, 3
      %p240 = por %p238, %p239
      %p241 = scmp.ne.s32.totalorder %s230, %s231
      %p242 = scmp.eq.s32.totalorder %s24, 0
      %p243 = por %p241, %p242
      %p244 = scmp.ne.s32.totalorder %s230, %s231
      %p245 = scmp.eq.s32.totalorder %s25, 3
      %p246 = por %p244, %p245
      %p248 = scmp.ne.s32.totalorder %s231, %s247
      %p249 = scmp.eq.s32.totalorder %s25, 0
      %p250 = por %p248, %p249
      %p251 = scmp.le.s32.totalorder 1, %s19
      %p252 = scmp.lt.s32.totalorder %s19, 5
      %p253 = pnand %p251, %p252
      %p254 = pneg %p253
      // Predicated region
      $region9: #{mlp_forward.1} parent=5 // pred_check
        _
      $region10: #{mlp_forward.1} parent=5 // pred_check_branch
        %256 = sbr.rel (%p253) target = $region12
      $region11: #{mlp_forward.1} parent=5 // pred_region
        %s257 = ssub.s32 %s19, 1
      $region12: #{mlp_forward.1} parent=5 // pred_fallthru
        _
      %p258 = scmp.lt.s32.totalorder %s19, 4
      // Predicated region
      $region13: #{mlp_forward.1} parent=5 // pred_check
        %p259 = pneg %p258
      $region14: #{mlp_forward.1} parent=5 // pred_check_branch
        %261 = sbr.rel (%p259) target = $region16
      $region15: #{mlp_forward.1} parent=5 // pred_region
        // Predicated region
        $region17: #{mlp_forward.1} parent=15 // pred_check
          %p262 = pneg %p53
        $region18: #{mlp_forward.1} parent=15 // pred_check_branch
          %264 = sbr.rel (%p262) target = $region20
        $region19: #{mlp_forward.1} parent=15 // pred_region
          %s265 = smul.u32 2, %s27
          %p266 = scmp.lt.s32.totalorder %s26, 3
          %s267 = scalar_select %p266, %s26, 3
          %p268 = scmp.lt.s32.totalorder %s265, 1
          %s269 = scalar_select %p268, %s265, 1
          %s270 = smul.addr %s267, 2
          %s271 = sadd.s32 %s269, %s270
          %s272 = smul.addr %s271, 8
          %s273 = scalar_lea.vmem %s0, %s272
          %s274 = smul.u32 2, %s27
        $region20: #{mlp_forward.1} parent=15 // pred_fallthru
          _
        // Predicated region
        $region21: #{mlp_forward.1} parent=15 // pred_check
          %p275 = pneg %p79
        $region22: #{mlp_forward.1} parent=15 // pred_check_branch
          %277 = sbr.rel (%p275) target = $region24
        $region23: #{mlp_forward.1} parent=15 // pred_region
          %s278 = sand.u32 %s69, 1
          %s279 = scalar_lea.sflag [#allocation3], %s278
          %s280 = sand.u32 %s69, 1
          %s281 = smul.addr %s280, 64
          %s282 = scalar_lea.vmem [#allocation2], %s281
          %s284 = ssub.s32 1024, 1024
          %285 = vsyncadd %s279, %s284
          %s286 = smul.addr %s26, 16
          %s287 = smul.addr %s286, 64
          %s288 = scalar_lea.hbm %s1, %s287
          %s289 = sshll.u32 %s282, 4
          %s290 = int_to_ptr.vmem [resolvable:$true] %s289
          %295 = dma.hbm_to_vmem [thread:$0]  %s288, 1024, %s290, %s279, 64, 64, 4
        $region24: #{mlp_forward.1} parent=15 // pred_fallthru
          _
        // Predicated region
        $region25: #{mlp_forward.1} parent=15 // pred_check
          %p296 = pneg %p105
        $region26: #{mlp_forward.1} parent=15 // pred_check_branch
          %298 = sbr.rel (%p296) target = $region28
        $region27: #{mlp_forward.1} parent=15 // pred_region
          %p299 = scmp.lt.s32.totalorder %s26, 3
          %s300 = scalar_select %p299, %s26, 3
          %s301 = scalar_lea.vmem %s2, %s300
        $region28: #{mlp_forward.1} parent=15 // pred_fallthru
          _
        // Predicated region
        $region29: #{mlp_forward.1} parent=15 // pred_check
          %p302 = pneg %p131
        $region30: #{mlp_forward.1} parent=15 // pred_check_branch
          %304 = sbr.rel (%p302) target = $region32
        $region31: #{mlp_forward.1} parent=15 // pred_region
          %s305 = sand.u32 %s19, 1
          %s306 = scalar_lea.sflag [#allocation5], %s305
          %s307 = sand.u32 %s121, 1
          %s308 = smul.addr %s307, 64
          %s309 = scalar_lea.vmem [#allocation4], %s308
          %s311 = ssub.s32 1024, 1024
          %312 = vsyncadd %s306, %s311
          %s313 = smul.addr %s26, 16
          %s314 = smul.addr %s313, 64
          %s315 = scalar_lea.hbm %s3, %s314
          %s316 = sshll.u32 %s309, 4
          %s317 = int_to_ptr.vmem [resolvable:$true] %s316
          %322 = dma.hbm_to_vmem [thread:$0]  %s315, 1024, %s317, %s306, 64, 64, 4
        $region32: #{mlp_forward.1} parent=15 // pred_fallthru
          _
        // Predicated region
        $region33: #{mlp_forward.1} parent=15 // pred_check
          %p323 = pneg %p157
        $region34: #{mlp_forward.1} parent=15 // pred_check_branch
          %325 = sbr.rel (%p323) target = $region36
        $region35: #{mlp_forward.1} parent=15 // pred_region
          %p326 = scmp.lt.s32.totalorder %s26, 3
          %s327 = scalar_select %p326, %s26, 3
          %s328 = scalar_lea.vmem %s4, %s327
        $region36: #{mlp_forward.1} parent=15 // pred_fallthru
          _
        // Predicated region
        $region37: #{mlp_forward.1} parent=15 // pred_check
          %p329 = pneg %p183
        $region38: #{mlp_forward.1} parent=15 // pred_check_branch
          %331 = sbr.rel (%p329) target = $region40
        $region39: #{mlp_forward.1} parent=15 // pred_region
          %s332 = sand.u32 %s19, 1
          %s333 = scalar_lea.sflag [#allocation5], %s332
          %s334 = sand.u32 %s173, 1
          %s335 = smul.addr %s334, 64
          %s336 = scalar_lea.vmem [#allocation6], %s335
          %s338 = ssub.s32 1024, 1024
          %339 = vsyncadd %s333, %s338
          %s340 = smul.addr %s26, 16
          %s341 = smul.addr %s340, 64
          %s342 = scalar_lea.hbm %s5, %s341
          %s343 = sshll.u32 %s336, 4
          %s344 = int_to_ptr.vmem [resolvable:$true] %s343
          %349 = dma.hbm_to_vmem [thread:$0]  %s342, 1024, %s344, %s333, 64, 64, 4
        $region40: #{mlp_forward.1} parent=15 // pred_fallthru
          _
        // Predicated region
        $region41: #{mlp_forward.1} parent=15 // pred_check
          %p350 = pneg %p209
        $region42: #{mlp_forward.1} parent=15 // pred_check_branch
          %352 = sbr.rel (%p350) target = $region44
        $region43: #{mlp_forward.1} parent=15 // pred_region
          %p353 = scmp.lt.s32.totalorder %s26, 3
          %s354 = scalar_select %p353, %s26, 3
          %s355 = scalar_lea.vmem %s6, %s354
        $region44: #{mlp_forward.1} parent=15 // pred_fallthru
          _
      $region16: #{mlp_forward.1} parent=5 // pred_fallthru
        _
      %p356 = scmp.le.s32.totalorder 1, %s19
      %p357 = scmp.lt.s32.totalorder %s19, 5
      %p358 = pnand %p356, %p357
      %p359 = pneg %p358
      // Predicated region
      $region45: #{mlp_forward.1} parent=5 // pred_check
        _
      $region46: #{mlp_forward.1} parent=5 // pred_check_branch
        %361 = sbr.rel (%p358) target = $region48
      $region47: #{mlp_forward.1} parent=5 // pred_region
        %s362 = ssub.s32 %s19, 1
        %s363 = sand.u32 %s72, 1
        %s364 = scalar_lea.sflag [#allocation3], %s363
        %s365 = sand.u32 %s72, 1
        %s366 = smul.addr %s365, 64
        %s367 = scalar_lea.vmem [#allocation2], %s366
        // Predicated region
        $region49: #{mlp_forward.1} parent=47 // pred_check
          %p368 = pneg %p85
        $region50: #{mlp_forward.1} parent=47 // pred_check_branch
          %370 = sbr.rel (%p368) target = $region52
        $region51: #{mlp_forward.1} parent=47 // pred_region
          %371 = dma.done %s364, 1024
        $region52: #{mlp_forward.1} parent=47 // pred_fallthru
          _
        %s372 = sand.u32 %s24, 1
        %s373 = scalar_lea.sflag [#allocation5], %s372
        %s374 = sand.u32 %s124, 1
        %s375 = smul.addr %s374, 64
        %s376 = scalar_lea.vmem [#allocation4], %s375
        // Predicated region
        $region53: #{mlp_forward.1} parent=47 // pred_check
          %p377 = pneg %p137
        $region54: #{mlp_forward.1} parent=47 // pred_check_branch
          %379 = sbr.rel (%p377) target = $region56
        $region55: #{mlp_forward.1} parent=47 // pred_region
          %380 = dma.done %s373, 1024
        $region56: #{mlp_forward.1} parent=47 // pred_fallthru
          _
        %s381 = sand.u32 %s24, 1
        %s382 = scalar_lea.sflag [#allocation5], %s381
        %s383 = sand.u32 %s176, 1
        %s384 = smul.addr %s383, 64
        %s385 = scalar_lea.vmem [#allocation6], %s384
        // Predicated region
        $region57: #{mlp_forward.1} parent=47 // pred_check
          %p386 = pneg %p189
        $region58: #{mlp_forward.1} parent=47 // pred_check_branch
          %388 = sbr.rel (%p386) target = $region60
        $region59: #{mlp_forward.1} parent=47 // pred_region
          %389 = dma.done %s382, 1024
        $region60: #{mlp_forward.1} parent=47 // pred_fallthru
          _
        %s390 = smul.u32 2, %s29
        %p391 = scmp.lt.s32.totalorder %s28, 3
        %s392 = scalar_select %p391, %s28, 3
        %p393 = scmp.lt.s32.totalorder %s390, 1
        %s394 = scalar_select %p393, %s390, 1
        %s395 = smul.addr %s392, 2
        %s396 = sadd.s32 %s394, %s395
        %s397 = smul.addr %s396, 8
        %s398 = scalar_lea.vmem %s0, %s397
        %p399 = pneg %p59
        %p400 = pneg %p56
        %s401 = sand.u32 %s72, 1
        %s402 = scalar_lea.sflag [#allocation3], %s401
        %s403 = sand.u32 %s72, 1
        %s404 = smul.addr %s403, 64
        %s405 = scalar_lea.vmem [#allocation2], %s404
        %p406 = pneg %p85
        %p407 = pneg %p82
        %p408 = scmp.lt.s32.totalorder %s28, 3
        %s409 = scalar_select %p408, %s28, 3
        %s410 = scalar_lea.vmem %s2, %s409
        %p411 = pneg %p111
        %p412 = pneg %p108
        %s413 = sand.u32 %s24, 1
        %s414 = scalar_lea.sflag [#allocation5], %s413
        %s415 = sand.u32 %s124, 1
        %s416 = smul.addr %s415, 64
        %s417 = scalar_lea.vmem [#allocation4], %s416
        %p418 = pneg %p137
        %p419 = pneg %p134
        %p420 = scmp.lt.s32.totalorder %s28, 3
        %s421 = scalar_select %p420, %s28, 3
        %s422 = scalar_lea.vmem %s4, %s421
        %p423 = pneg %p163
        %p424 = pneg %p160
        %s425 = sand.u32 %s24, 1
        %s426 = scalar_lea.sflag [#allocation5], %s425
        %s427 = sand.u32 %s176, 1
        %s428 = smul.addr %s427, 64
        %s429 = scalar_lea.vmem [#allocation6], %s428
        %p430 = pneg %p189
        %p431 = pneg %p186
        %p432 = scmp.lt.s32.totalorder %s28, 3
        %s433 = scalar_select %p432, %s28, 3
        %s434 = scalar_lea.vmem %s6, %s433
        %p435 = pneg %p215
        %p436 = pneg %p212
        %p437 = pneg %p243
        %p438 = pneg %p240
        %s439 = smul.u32 2, %s29
        %p440 = scmp.lt.s32.totalorder %s28, 3
        %s441 = scalar_select %p440, %s28, 3
        %p442 = scmp.lt.s32.totalorder %s439, 1
        %s443 = scalar_select %p442, %s439, 1
        %s444 = smul.addr %s441, 2
        %s445 = sadd.s32 %s443, %s444
        %s446 = smul.addr %s445, 8
        %s447 = scalar_lea.vmem %s7, %s446
        %s448 = smul.u32 2, %s29
        %p449 = scmp.lt.s32.totalorder %s28, 3
        %s450 = scalar_select %p449, %s28, 3
        %p451 = scmp.lt.s32.totalorder %s448, 1
        %s452 = scalar_select %p451, %s448, 1
        %s453 = smul.addr %s450, 2
        %s454 = sadd.s32 %s452, %s453
        %s455 = smul.addr %s454, 8
        %s456 = scalar_lea.vmem %s0, %s455
        %s457 = smul.u32 2, %s29
        %p458 = scmp.lt.s32.totalorder %s28, 3
        %s459 = scalar_select %p458, %s28, 3
        %s460 = scalar_lea.vmem %s2, %s459
        %p461 = scmp.lt.s32.totalorder %s28, 3
        %s462 = scalar_select %p461, %s28, 3
        %s463 = scalar_lea.vmem %s4, %s462
        %p464 = scmp.lt.s32.totalorder %s28, 3
        %s465 = scalar_select %p464, %s28, 3
        %s466 = scalar_lea.vmem %s6, %s465
        %s467 = smul.u32 2, %s29
        %p468 = scmp.lt.s32.totalorder %s28, 3
        %s469 = scalar_select %p468, %s28, 3
        %p470 = scmp.lt.s32.totalorder %s467, 1
        %s471 = scalar_select %p470, %s467, 1
        %s472 = smul.addr %s469, 2
        %s473 = sadd.s32 %s471, %s472
        %s474 = smul.addr %s473, 8
        %s475 = scalar_lea.vmem %s7, %s474
        %s476 = smul.u32 2, %s29
        %v478 = vld [vmem:[%s456] sm:$0xff]
        %v479 = vld [vmem:[%s456 + $0x8] sm:$0xff]
        %v480 = vpack.c.bf16 %v479, %v478
        %v481 = vld [vmem:[%s367] sm:$0xf]
        %v482 = vld [vmem:[%s367 + $0x4] sm:$0xf]
        %v483 = vld [vmem:[%s367 + $0x8] sm:$0xf]
        %v484 = vld [vmem:[%s367 + $0xc] sm:$0xf]
        %v485 = vld [vmem:[%s367 + $0x10] sm:$0xf]
        %v486 = vld [vmem:[%s367 + $0x14] sm:$0xf]
        %v487 = vld [vmem:[%s367 + $0x18] sm:$0xf]
        %v488 = vld [vmem:[%s367 + $0x1c] sm:$0xf]
        %v489 = vld [vmem:[%s367 + $0x20] sm:$0xf]
        %v490 = vld [vmem:[%s367 + $0x24] sm:$0xf]
        %v491 = vld [vmem:[%s367 + $0x28] sm:$0xf]
        %v492 = vld [vmem:[%s367 + $0x2c] sm:$0xf]
        %v493 = vld [vmem:[%s367 + $0x30] sm:$0xf]
        %v494 = vld [vmem:[%s367 + $0x34] sm:$0xf]
        %v495 = vld [vmem:[%s367 + $0x38] sm:$0xf]
        %v496 = vld [vmem:[%s367 + $0x3c] sm:$0xf]
        %v497 = vld [vmem:[%s460] sm:$0x1]
        %v499 = vlaneseq
        %v500 = vshrl.u32 %v499, 7
        %v501 = vsub.s32 0, %v500
        %v502 = vrot.slane %v497, %v501
        %v520 = vunpack.c.l.b16 %v481
        %v521 = vunpack.c.l.b16 %v482
        %v522 = vunpack.c.l.b16 %v483
        %v523 = vunpack.c.l.b16 %v484
        %v524 = vunpack.c.l.b16 %v485
        %v525 = vunpack.c.l.b16 %v486
        %v526 = vunpack.c.l.b16 %v487
        %v527 = vunpack.c.l.b16 %v488
        %v528 = vunpack.c.l.b16 %v489
        %v529 = vunpack.c.l.b16 %v490
        %v530 = vunpack.c.l.b16 %v491
        %v531 = vunpack.c.l.b16 %v492
        %v532 = vunpack.c.l.b16 %v493
        %v533 = vunpack.c.l.b16 %v494
        %v534 = vunpack.c.l.b16 %v495
        %v535 = vunpack.c.l.b16 %v496
        %v536 = vpack.c.b16 %v521, %v520
        %v537 = vpack.c.b16 %v523, %v522
        %v538 = vpack.c.b16 %v525, %v524
        %v539 = vpack.c.b16 %v527, %v526
        %v540 = vpack.c.b16 %v529, %v528
        %v541 = vpack.c.b16 %v531, %v530
        %v542 = vpack.c.b16 %v533, %v532
        %v543 = vpack.c.b16 %v535, %v534
        %552 = vmatprep.subr.bf16.mxu0 0
        %553 = vmatpush1.bf16.msra.mxu0 %v536
        %554 = vmatprep.subr.bf16.mxu0 0
        %555 = vmatpush1.bf16.msra.mxu0 %v537
        %556 = vmatprep.subr.bf16.mxu0 0
        %557 = vmatpush1.bf16.msra.mxu0 %v538
        %558 = vmatprep.subr.bf16.mxu0 0
        %559 = vmatpush1.bf16.msra.mxu0 %v539
        %560 = vmatprep.subr.bf16.mxu0 0
        %561 = vmatpush1.bf16.msra.mxu0 %v540
        %562 = vmatprep.subr.bf16.mxu0 0
        %563 = vmatpush1.bf16.msra.mxu0 %v541
        %564 = vmatprep.subr.bf16.mxu0 0
        %565 = vmatpush1.bf16.msra.mxu0 %v542
        %566 = vmatprep.subr.bf16.mxu0 0
        %567 = vmatpush1.bf16.msra.mxu0 %v543
        %568 = vmatprep.subr.bf16.mxu0 0
        %569 = vmatpush1.bf16.msra.mxu0 0
        %570 = vmatprep.subr.bf16.mxu0 0
        %571 = vmatpush1.bf16.msra.mxu0 0
        %572 = vmatprep.subr.bf16.mxu0 0
        %573 = vmatpush1.bf16.msra.mxu0 0
        %574 = vmatprep.subr.bf16.mxu0 0
        %575 = vmatpush1.bf16.msra.mxu0 0
        %576 = vmatprep.subr.bf16.mxu0 0
        %577 = vmatpush1.bf16.msra.mxu0 0
        %578 = vmatprep.subr.bf16.mxu0 0
        %579 = vmatpush1.bf16.msra.mxu0 0
        %580 = vmatprep.subr.bf16.mxu0 0
        %581 = vmatpush1.bf16.msra.mxu0 0
        %582 = vmatprep.subr.bf16.mxu0 0
        %583 = vmatpush1.bf16.msra.mxu0 0
        %584 = vmatprep.mubr.bf16.mxu0 0
        %585 = vmatmul.mubr.bf16.gmra.mrb[0].mxu0 %v480
        %v586 = vpop.f32.mrb[0].mxu0
        %v587 = vadd.f32 %v502, %v586
        %v588 = vpop.f32.mrb[0].mxu0
        %v589 = vpop.f32.mrb[0].mxu0
        %v590 = vadd.f32 %v502, %v589
        %v591 = vpop.f32.mrb[0].mxu0
        %592 = vdwg.mxu0
        %v593 = vmax.f32 %v587, 0.0
        %v594 = vmax.f32 %v590, 0.0
        %v595 = vpack.c.bf16 %v594, %v593
        %v596 = vld [vmem:[%s376] sm:$0xf]
        %v597 = vld [vmem:[%s376 + $0x4] sm:$0xf]
        %v598 = vld [vmem:[%s376 + $0x8] sm:$0xf]
        %v599 = vld [vmem:[%s376 + $0xc] sm:$0xf]
        %v600 = vld [vmem:[%s376 + $0x10] sm:$0xf]
        %v601 = vld [vmem:[%s376 + $0x14] sm:$0xf]
        %v602 = vld [vmem:[%s376 + $0x18] sm:$0xf]
        %v603 = vld [vmem:[%s376 + $0x1c] sm:$0xf]
        %v604 = vld [vmem:[%s376 + $0x20] sm:$0xf]
        %v605 = vld [vmem:[%s376 + $0x24] sm:$0xf]
        %v606 = vld [vmem:[%s376 + $0x28] sm:$0xf]
        %v607 = vld [vmem:[%s376 + $0x2c] sm:$0xf]
        %v608 = vld [vmem:[%s376 + $0x30] sm:$0xf]
        %v609 = vld [vmem:[%s376 + $0x34] sm:$0xf]
        %v610 = vld [vmem:[%s376 + $0x38] sm:$0xf]
        %v611 = vld [vmem:[%s376 + $0x3c] sm:$0xf]
        %v612 = vld [vmem:[%s463] sm:$0x1]
        %v614 = vlaneseq
        %v615 = vshrl.u32 %v614, 7
        %v616 = vsub.s32 0, %v615
        %v617 = vrot.slane %v612, %v616
        %v635 = vunpack.c.l.b16 %v596
        %v636 = vunpack.c.l.b16 %v597
        %v637 = vunpack.c.l.b16 %v598
        %v638 = vunpack.c.l.b16 %v599
        %v639 = vunpack.c.l.b16 %v600
        %v640 = vunpack.c.l.b16 %v601
        %v641 = vunpack.c.l.b16 %v602
        %v642 = vunpack.c.l.b16 %v603
        %v643 = vunpack.c.l.b16 %v604
        %v644 = vunpack.c.l.b16 %v605
        %v645 = vunpack.c.l.b16 %v606
        %v646 = vunpack.c.l.b16 %v607
        %v647 = vunpack.c.l.b16 %v608
        %v648 = vunpack.c.l.b16 %v609
        %v649 = vunpack.c.l.b16 %v610
        %v650 = vunpack.c.l.b16 %v611
        %v651 = vpack.c.b16 %v636, %v635
        %v652 = vpack.c.b16 %v638, %v637
        %v653 = vpack.c.b16 %v640, %v639
        %v654 = vpack.c.b16 %v642, %v641
        %v655 = vpack.c.b16 %v644, %v643
        %v656 = vpack.c.b16 %v646, %v645
        %v657 = vpack.c.b16 %v648, %v647
        %v658 = vpack.c.b16 %v650, %v649
        %667 = vmatprep.subr.bf16.mxu0 0
        %668 = vmatpush1.bf16.msra.mxu0 %v651
        %669 = vmatprep.subr.bf16.mxu0 0
        %670 = vmatpush1.bf16.msra.mxu0 %v652
        %671 = vmatprep.subr.bf16.mxu0 0
        %672 = vmatpush1.bf16.msra.mxu0 %v653
        %673 = vmatprep.subr.bf16.mxu0 0
        %674 = vmatpush1.bf16.msra.mxu0 %v654
        %675 = vmatprep.subr.bf16.mxu0 0
        %676 = vmatpush1.bf16.msra.mxu0 %v655
        %677 = vmatprep.subr.bf16.mxu0 0
        %678 = vmatpush1.bf16.msra.mxu0 %v656
        %679 = vmatprep.subr.bf16.mxu0 0
        %680 = vmatpush1.bf16.msra.mxu0 %v657
        %681 = vmatprep.subr.bf16.mxu0 0
        %682 = vmatpush1.bf16.msra.mxu0 %v658
        %683 = vmatprep.subr.bf16.mxu0 0
        %684 = vmatpush1.bf16.msra.mxu0 0
        %685 = vmatprep.subr.bf16.mxu0 0
        %686 = vmatpush1.bf16.msra.mxu0 0
        %687 = vmatprep.subr.bf16.mxu0 0
        %688 = vmatpush1.bf16.msra.mxu0 0
        %689 = vmatprep.subr.bf16.mxu0 0
        %690 = vmatpush1.bf16.msra.mxu0 0
        %691 = vmatprep.subr.bf16.mxu0 0
        %692 = vmatpush1.bf16.msra.mxu0 0
        %693 = vmatprep.subr.bf16.mxu0 0
        %694 = vmatpush1.bf16.msra.mxu0 0
        %695 = vmatprep.subr.bf16.mxu0 0
        %696 = vmatpush1.bf16.msra.mxu0 0
        %697 = vmatprep.subr.bf16.mxu0 0
        %698 = vmatpush1.bf16.msra.mxu0 0
        %699 = vmatprep.mubr.bf16.mxu0 0
        %700 = vmatmul.mubr.bf16.gmra.mrb[0].mxu0 %v595
        %v701 = vpop.f32.mrb[0].mxu0
        %v702 = vadd.f32 %v617, %v701
        %v703 = vpop.f32.mrb[0].mxu0
        %v704 = vpop.f32.mrb[0].mxu0
        %v705 = vadd.f32 %v617, %v704
        %v706 = vpop.f32.mrb[0].mxu0
        %707 = vdwg.mxu0
        %v708 = vmax.f32 %v702, 0.0
        %v709 = vmax.f32 %v705, 0.0
        %v710 = vpack.c.bf16 %v709, %v708
        %v711 = vld [vmem:[%s385] sm:$0xf]
        %v712 = vld [vmem:[%s385 + $0x4] sm:$0xf]
        %v713 = vld [vmem:[%s385 + $0x8] sm:$0xf]
        %v714 = vld [vmem:[%s385 + $0xc] sm:$0xf]
        %v715 = vld [vmem:[%s385 + $0x10] sm:$0xf]
        %v716 = vld [vmem:[%s385 + $0x14] sm:$0xf]
        %v717 = vld [vmem:[%s385 + $0x18] sm:$0xf]
        %v718 = vld [vmem:[%s385 + $0x1c] sm:$0xf]
        %v719 = vld [vmem:[%s385 + $0x20] sm:$0xf]
        %v720 = vld [vmem:[%s385 + $0x24] sm:$0xf]
        %v721 = vld [vmem:[%s385 + $0x28] sm:$0xf]
        %v722 = vld [vmem:[%s385 + $0x2c] sm:$0xf]
        %v723 = vld [vmem:[%s385 + $0x30] sm:$0xf]
        %v724 = vld [vmem:[%s385 + $0x34] sm:$0xf]
        %v725 = vld [vmem:[%s385 + $0x38] sm:$0xf]
        %v726 = vld [vmem:[%s385 + $0x3c] sm:$0xf]
        %v727 = vld [vmem:[%s466] sm:$0x1]
        %v729 = vlaneseq
        %v730 = vshrl.u32 %v729, 7
        %v731 = vsub.s32 0, %v730
        %v732 = vrot.slane %v727, %v731
        %v750 = vunpack.c.l.b16 %v711
        %v751 = vunpack.c.l.b16 %v712
        %v752 = vunpack.c.l.b16 %v713
        %v753 = vunpack.c.l.b16 %v714
        %v754 = vunpack.c.l.b16 %v715
        %v755 = vunpack.c.l.b16 %v716
        %v756 = vunpack.c.l.b16 %v717
        %v757 = vunpack.c.l.b16 %v718
        %v758 = vunpack.c.l.b16 %v719
        %v759 = vunpack.c.l.b16 %v720
        %v760 = vunpack.c.l.b16 %v721
        %v761 = vunpack.c.l.b16 %v722
        %v762 = vunpack.c.l.b16 %v723
        %v763 = vunpack.c.l.b16 %v724
        %v764 = vunpack.c.l.b16 %v725
        %v765 = vunpack.c.l.b16 %v726
        %v766 = vpack.c.b16 %v751, %v750
        %v767 = vpack.c.b16 %v753, %v752
        %v768 = vpack.c.b16 %v755, %v754
        %v769 = vpack.c.b16 %v757, %v756
        %v770 = vpack.c.b16 %v759, %v758
        %v771 = vpack.c.b16 %v761, %v760
        %v772 = vpack.c.b16 %v763, %v762
        %v773 = vpack.c.b16 %v765, %v764
        %782 = vmatprep.subr.bf16.mxu0 0
        %783 = vmatpush1.bf16.msra.mxu0 %v766
        %784 = vmatprep.subr.bf16.mxu0 0
        %785 = vmatpush1.bf16.msra.mxu0 %v767
        %786 = vmatprep.subr.bf16.mxu0 0
        %787 = vmatpush1.bf16.msra.mxu0 %v768
        %788 = vmatprep.subr.bf16.mxu0 0
        %789 = vmatpush1.bf16.msra.mxu0 %v769
        %790 = vmatprep.subr.bf16.mxu0 0
        %791 = vmatpush1.bf16.msra.mxu0 %v770
        %792 = vmatprep.subr.bf16.mxu0 0
        %793 = vmatpush1.bf16.msra.mxu0 %v771
        %794 = vmatprep.subr.bf16.mxu0 0
        %795 = vmatpush1.bf16.msra.mxu0 %v772
        %796 = vmatprep.subr.bf16.mxu0 0
        %797 = vmatpush1.bf16.msra.mxu0 %v773
        %798 = vmatprep.subr.bf16.mxu0 0
        %799 = vmatpush1.bf16.msra.mxu0 0
        %800 = vmatprep.subr.bf16.mxu0 0
        %801 = vmatpush1.bf16.msra.mxu0 0
        %802 = vmatprep.subr.bf16.mxu0 0
        %803 = vmatpush1.bf16.msra.mxu0 0
        %804 = vmatprep.subr.bf16.mxu0 0
        %805 = vmatpush1.bf16.msra.mxu0 0
        %806 = vmatprep.subr.bf16.mxu0 0
        %807 = vmatpush1.bf16.msra.mxu0 0
        %808 = vmatprep.subr.bf16.mxu0 0
        %809 = vmatpush1.bf16.msra.mxu0 0
        %810 = vmatprep.subr.bf16.mxu0 0
        %811 = vmatpush1.bf16.msra.mxu0 0
        %812 = vmatprep.subr.bf16.mxu0 0
        %813 = vmatpush1.bf16.msra.mxu0 0
        %814 = vmatprep.mubr.bf16.mxu0 0
        %815 = vmatmul.mubr.bf16.gmra.mrb[0].mxu0 %v710
        %v816 = vpop.f32.mrb[0].mxu0
        %v817 = vadd.f32 %v732, %v816
        %v818 = vpop.f32.mrb[0].mxu0
        %v819 = vpop.f32.mrb[0].mxu0
        %v820 = vadd.f32 %v732, %v819
        %v821 = vpop.f32.mrb[0].mxu0
        %822 = vdwg.mxu0
        %823 = vst [vmem:[%s475] sm:$0xff] %v817
        %824 = vst [vmem:[%s475 + $0x8] sm:$0xff] %v820
        %s825 = smul.u32 2, %s29
        %p826 = scmp.lt.s32.totalorder %s28, 3
        %s827 = scalar_select %p826, %s28, 3
        %p828 = scmp.lt.s32.totalorder %s825, 1
        %s829 = scalar_select %p828, %s825, 1
        %s830 = smul.addr %s827, 2
        %s831 = sadd.s32 %s829, %s830
        %s832 = smul.addr %s831, 8
        %s833 = scalar_lea.vmem %s7, %s832
        // Predicated region
        $region61: #{mlp_forward.1} parent=47 // pred_check
          %p834 = pneg %p240
        $region62: #{mlp_forward.1} parent=47 // pred_check_branch
          %836 = sbr.rel (%p834) target = $region64
        $region63: #{mlp_forward.1} parent=47 // pred_region
          %s837 = smul.u32 2, %s29
        $region64: #{mlp_forward.1} parent=47 // pred_fallthru
          _
      $region48: #{mlp_forward.1} parent=5 // pred_fallthru
        _
      %p838 = scmp.le.s32.totalorder 2, %s19
      // Predicated region
      $region65: #{mlp_forward.1} parent=5 // pred_check
        %p839 = pneg %p838
      $region66: #{mlp_forward.1} parent=5 // pred_check_branch
        %841 = sbr.rel (%p839) target = $region68
      $region67: #{mlp_forward.1} parent=5 // pred_region
        %s842 = ssub.s32 %s19, 2
        // Predicated region
        $region69: #{mlp_forward.1} parent=67 // pred_check
          %p843 = pneg %p246
        $region70: #{mlp_forward.1} parent=67 // pred_check_branch
          %845 = sbr.rel (%p843) target = $region72
        $region71: #{mlp_forward.1} parent=67 // pred_region
          %s846 = smul.u32 2, %s31
          %p847 = scmp.lt.s32.totalorder %s30, 3
          %s848 = scalar_select %p847, %s30, 3
          %p849 = scmp.lt.s32.totalorder %s846, 1
          %s850 = scalar_select %p849, %s846, 1
          %s851 = smul.addr %s848, 2
          %s852 = sadd.s32 %s850, %s851
          %s853 = smul.addr %s852, 8
          %s854 = scalar_lea.vmem %s7, %s853
        $region72: #{mlp_forward.1} parent=67 // pred_fallthru
          _
      $region68: #{mlp_forward.1} parent=5 // pred_fallthru
        _
    $region6: #{mlp_forward.1} parent=1 // loop_footer
      %s23 = sadd.s32 1, %s19
    $region7: #{mlp_forward.1} parent=1 // loop_footer_branch
      %18 = sbr.rel target = $region3
    $region8: #{mlp_forward.1} parent=1 // loop_exit
      _
    %855 = vsyncpa [#allocation3], 1
    %s856 = scalar_lea.sflag [#allocation3], 1
    %857 = vsyncpa %s856, 1
    %858 = vsyncpa [#allocation5], 1
    %s859 = scalar_lea.sflag [#allocation5], 1
    %860 = vsyncpa %s859, 1

</llo_original>
